<compile_context>
chip_gen: v7x
topology: tpu7x:2x2x1
jax: 0.10.0
libtpu: 0.0.40
codegen_flags: <defaults>
</compile_context>

<pallas_src>
from typing import Sequence, Union

import jax
import jax.numpy as jnp
from jax.experimental import pallas as pl
from jax.experimental.pallas import tpu as pltpu


def _sublane_pack(itemsize: int) -> int:
    # sublane packing: 8 rows for 32-bit, 16 for 16-bit, 32 for 8-bit dtypes
    return {1: 32, 2: 16}.get(itemsize, 8)


def _round_up(x: int, m: int) -> int:
    return -(-x // m) * m


def _vmem_capacity_bytes() -> int:
    """Per-core VMEM capacity; conservative fallback if the query fails."""
    try:
        info = pltpu.get_tpu_info()
        cap = getattr(info, "vmem_capacity_bytes", None)
        if cap:
            return int(cap)
    except Exception:
        pass
    return 64 * 1024 * 1024  # v7x per-TensorCore VMEM (smallest current part)


def _choose_batch_tile(B: int, total: int, itemsize: int,
                       budget_bytes: int) -> int:
    """Pick the batch tile (rows per grid step).

    VMEM per step ~= double-buffered inputs + output ~= 4 * rows * total *
    itemsize; budgeted with 5x slack.  The tile is kept at/above a ~512-row
    roofline floor (v6e: ~29% of HBM BW at 128 rows vs ~85% at 512+), while
    preferring >= 4 grid steps (>= 2 per TensorCore on dual-TC parts) and an
    even step count so the cores stay balanced and keep pipelining.
    """
    sub = _sublane_pack(itemsize)
    if B <= sub:
        return B                                     # full-array block; always legal
    bytes_per_row = max(1, 5 * total * itemsize)
    cap = max(sub, (min(B, budget_bytes // bytes_per_row) // sub) * sub)
    floor = min(cap, max(sub, 512))                  # don't fall off the roofline

    tile = cap
    four_step_tile = _round_up(pl.cdiv(B, 4), sub)   # ~4 grid steps
    if four_step_tile >= floor:
        tile = min(tile, four_step_tile)

    steps = pl.cdiv(B, tile)
    if steps > 1 and steps % 2 == 1:                 # prefer even step counts
        alt = _round_up(pl.cdiv(B, steps + 1), sub)
        if floor <= alt <= cap:
            tile = alt

    if tile >= B:
        return B
    return max(sub, tile)


def _make_cat_kernel(offsets, widths):
    """Kernel: one static-lane-offset store per source into the output tile."""
    def kernel(*refs):
        out_ref = refs[-1]
        for ref, off, w in zip(refs[:-1], offsets, widths):
            # Static slice; cast in VMEM so no extra HBM pass is needed for
            # torch.cat-style dtype promotion.
            out_ref[:, off:off + w] = ref[...].astype(out_ref.dtype)
    return kernel


def cat_interaction_arch(
    dense_features: jax.Array,
    sparse_features: Union[jax.Array, Sequence[jax.Array]],
    *,
    batch_tile: int | None = None,
    vmem_budget_bytes: int | None = None,
    vmem_limit_bytes: int | None = None,
) -> jax.Array:
    """Pallas implementation of CatInteractionArch.forward.

    Args:
      dense_features: (B, D) array.
      sparse_features: either the KeyedTensor's packed values buffer of shape
        (B, sum(D_f)) (contiguous in torchrec; to_dict() only makes views of
        it), or a sequence of per-feature (B, D_f) arrays in key order.
    Returns:
      (B, D + sum(D_f)) array == torch.cat((dense, *sparse_values), dim=1).
    """
    B, D = dense_features.shape

    if isinstance(sparse_features, (list, tuple)):
        sparse_list = list(sparse_features)
    else:
        sparse_list = [sparse_features]

    sources = [dense_features] + sparse_list
    total = 0
    kept = []
    for s in sources:
        assert s.ndim == 2 and s.shape[0] == B, s.shape
        total += int(s.shape[1])
        if s.shape[1] > 0:
            kept.append(s)                            # drop zero-width features

    out_dtype = jnp.result_type(*[s.dtype for s in sources])

    # Degenerate cases.
    if not kept:
        return jnp.zeros((B, 0), out_dtype)
    if len(kept) == 1:
        return kept[0].astype(out_dtype)

    widths = [int(s.shape[1]) for s in kept]
    offsets, off = [], 0
    for w in widths:
        offsets.append(off)
        off += w
    assert off == total

    itemsize = jnp.dtype(out_dtype).itemsize
    cap = _vmem_capacity_bytes()
    if vmem_budget_bytes is None:
        vmem_budget_bytes = cap // 4                  # ~25% of per-core VMEM
    if vmem_limit_bytes is None:
        vmem_limit_bytes = cap // 2                   # ~50% of per-core VMEM
    if batch_tile is None:
        batch_tile = _choose_batch_tile(B, total, itemsize, vmem_budget_bytes)
    sub = _sublane_pack(itemsize)
    assert batch_tile == B or batch_tile % sub == 0, (
        f"batch_tile must be a multiple of the sublane pack ({sub}) or == B")

    grid = (pl.cdiv(B, batch_tile),)                  # partial last block is fine
    idx = lambda i: (i, 0)
    kernel = _make_cat_kernel(offsets, widths)

    return pl.pallas_call(
        kernel,
        out_shape=jax.ShapeDtypeStruct((B, total), out_dtype),
        grid=grid,
        in_specs=[pl.BlockSpec((batch_tile, w), idx) for w in widths],
        out_specs=pl.BlockSpec((batch_tile, total), idx),
        compiler_params=pltpu.CompilerParams(
            dimension_semantics=("parallel",),
            vmem_limit_bytes=vmem_limit_bytes),
    )(*kept)


if __name__ == "__main__":
    # Small deterministic example consistent with the module:
    #   dense_features: B x D; sparse features: per-feature B x D_f values.
    B = 8
    D = 16
    embedding_dim_per_feature = [8, 16, 8]  # what __init__ receives

    key = jax.random.PRNGKey(0)
    k_dense, *k_sparse = jax.random.split(key, 1 + len(embedding_dim_per_feature))

    dense = jax.random.normal(k_dense, (B, D), dtype=jnp.float32)
    sparse_values = [
        jax.random.normal(k, (B, d), dtype=jnp.float32)
        for k, d in zip(k_sparse, embedding_dim_per_feature)
    ]

    # Reference: mirrors torch.cat((dense, *values), dim=1).
    ref = jnp.concatenate([dense] + list(sparse_values), axis=1)

    # Path 1: list of per-feature views (KeyedTensor.to_dict().values()).
    out = jax.block_until_ready(cat_interaction_arch(dense, sparse_values))
    assert out.shape == (B, D + sum(embedding_dim_per_feature)), out.shape
    assert jnp.allclose(out, ref), "mismatch vs reference (list path)"

    # Path 2: packed KeyedTensor.values() buffer (2-source fast path).
    packed = jnp.concatenate(list(sparse_values), axis=1)
    out2 = jax.block_until_ready(cat_interaction_arch(dense, packed))
    assert jnp.allclose(out2, ref), "mismatch vs reference (packed path)"

    print("KERNEL_OK")
</pallas_src>

<mosaic_0001>
module attributes {stable_mosaic.version = 11 : i64} {
  func.func @kernel(%arg0: i32, %arg1: memref<8x16xf32, #tpu.memory_space<vmem>>, %arg2: memref<8x8xf32, #tpu.memory_space<vmem>>, %arg3: memref<8x16xf32, #tpu.memory_space<vmem>>, %arg4: memref<8x8xf32, #tpu.memory_space<vmem>>, %arg5: memref<8x48xf32, #tpu.memory_space<vmem>>) attributes {dimension_semantics = [#tpu.dimension_semantics<parallel>], iteration_bounds = array<i64: 1>, scalar_prefetch = 0 : i64, scratch_operands = 0 : i64, tpu.core_type = #tpu.core_type<tc>, window_params = [{transform_indices = @transform_0, window_bounds = array<i64: 8, 16>}, {transform_indices = @transform_1, window_bounds = array<i64: 8, 8>}, {transform_indices = @transform_2, window_bounds = array<i64: 8, 16>}, {transform_indices = @transform_3, window_bounds = array<i64: 8, 8>}, {transform_indices = @transform_4, window_bounds = array<i64: 8, 48>}]} {
    %c0 = arith.constant 0 : index
    %c0_0 = arith.constant 0 : index
    %0 = vector.load %arg1[%c0, %c0_0] : memref<8x16xf32, #tpu.memory_space<vmem>>, vector<8x16xf32>
    %c0_1 = arith.constant 0 : index
    %c0_2 = arith.constant 0 : index
    %1 = vector.load %arg5[%c0_1, %c0_2] : memref<8x48xf32, #tpu.memory_space<vmem>>, vector<8x16xf32>
    tpu.vector_store %arg5[%c0_1, %c0_2], %0 {strides = array<i32>} : memref<8x48xf32, #tpu.memory_space<vmem>>, vector<8x16xf32>,
    %c0_3 = arith.constant 0 : index
    %c0_4 = arith.constant 0 : index
    %2 = vector.load %arg2[%c0_3, %c0_4] : memref<8x8xf32, #tpu.memory_space<vmem>>, vector<8x8xf32>
    %c0_5 = arith.constant 0 : index
    %c16 = arith.constant 16 : index
    %3 = vector.load %arg5[%c0_5, %c16] : memref<8x48xf32, #tpu.memory_space<vmem>>, vector<8x8xf32>
    tpu.vector_store %arg5[%c0_5, %c16], %2 {strides = array<i32>} : memref<8x48xf32, #tpu.memory_space<vmem>>, vector<8x8xf32>,
    %c0_6 = arith.constant 0 : index
    %c0_7 = arith.constant 0 : index
    %4 = vector.load %arg3[%c0_6, %c0_7] : memref<8x16xf32, #tpu.memory_space<vmem>>, vector<8x16xf32>
    %c0_8 = arith.constant 0 : index
    %c24 = arith.constant 24 : index
    %5 = vector.load %arg5[%c0_8, %c24] : memref<8x48xf32, #tpu.memory_space<vmem>>, vector<8x16xf32>
    tpu.vector_store %arg5[%c0_8, %c24], %4 {strides = array<i32>} : memref<8x48xf32, #tpu.memory_space<vmem>>, vector<8x16xf32>,
    %c0_9 = arith.constant 0 : index
    %c0_10 = arith.constant 0 : index
    %6 = vector.load %arg4[%c0_9, %c0_10] : memref<8x8xf32, #tpu.memory_space<vmem>>, vector<8x8xf32>
    %c0_11 = arith.constant 0 : index
    %c40 = arith.constant 40 : index
    %7 = vector.load %arg5[%c0_11, %c40] : memref<8x48xf32, #tpu.memory_space<vmem>>, vector<8x8xf32>
    tpu.vector_store %arg5[%c0_11, %c40], %6 {strides = array<i32>} : memref<8x48xf32, #tpu.memory_space<vmem>>, vector<8x8xf32>,
    return
  }
  func.func @transform_0(%arg0: i32) -> (i32, i32) {
    %c0_i32 = arith.constant 0 : i32
    %c0_i32_0 = arith.constant 0 : i32
    return %arg0, %c0_i32 : i32, i32
  }
  func.func @transform_1(%arg0: i32) -> (i32, i32) {
    %c0_i32 = arith.constant 0 : i32
    %c0_i32_0 = arith.constant 0 : i32
    return %arg0, %c0_i32 : i32, i32
  }
  func.func @transform_2(%arg0: i32) -> (i32, i32) {
    %c0_i32 = arith.constant 0 : i32
    %c0_i32_0 = arith.constant 0 : i32
    return %arg0, %c0_i32 : i32, i32
  }
  func.func @transform_3(%arg0: i32) -> (i32, i32) {
    %c0_i32 = arith.constant 0 : i32
    %c0_i32_0 = arith.constant 0 : i32
    return %arg0, %c0_i32 : i32, i32
  }
  func.func @transform_4(%arg0: i32) -> (i32, i32) {
    %c0_i32 = arith.constant 0 : i32
    %c0_i32_0 = arith.constant 0 : i32
    return %arg0, %c0_i32 : i32, i32
  }
}

</mosaic_0001>

<llo_original>
// kernel: tpu_custom_call.1
$region0: #{tpu_custom_call.1}
  #allocation0 [shape = 'u32[]', space=smem, size = 0x4, offset = 0x4, fixed_abs, tag = 'smem constant byte address 0x4 - core index']
  #allocation1 [shape = 'u32[144,128]{1,0:T(1,128)}', space=vmem, size = 0x12000, scoped, tag = 'internal scratch']
  %s0 = inlined_call_operand.hbm [shape: f32[8,16], index: 0, kind: input, shape index: {}]
  %s1 = inlined_call_operand.hbm [shape: f32[8,8], index: 1, kind: input, shape index: {}]
  %s2 = inlined_call_operand.hbm [shape: f32[8,16], index: 2, kind: input, shape index: {}]
  %s3 = inlined_call_operand.vmem [shape: f32[8,8], index: 3, kind: input, shape index: {}]
  %s4 = inlined_call_operand.hbm [shape: f32[8,48], index: 4, kind: output, shape index: {}]
  %s5 = sld [smem:[#allocation0]]
  $region38: #{tpu_custom_call.1} parent=0
    _
  %s7 = ssub.s32 1, %s5
  %s8 = scalar_select 0, %s7, %s5
  $region1: #{tpu_custom_call.1} parent=0
    #allocation2 [shape = 'u8[4096]{0}', space=vmem, size = 0x1000, scoped, tag = 'input window, operand 0, single buffered']
    #allocation3 [shape = 's32[1]{0}', space=sflag, size = 0x4, scoped, tag = 'scoped memory for tpu_custom_call.1']
    #allocation4 [shape = 's32[1]{0}', space=sflag, size = 0x4, scoped, tag = 'scoped memory for tpu_custom_call.1']
    #allocation5 [shape = 'u8[4096]{0}', space=vmem, size = 0x1000, scoped, tag = 'input window, operand 1, single buffered']
    #allocation6 [shape = 's32[1]{0}', space=sflag, size = 0x4, scoped, tag = 'scoped memory for tpu_custom_call.1']
    #allocation7 [shape = 'u8[4096]{0}', space=vmem, size = 0x1000, scoped, tag = 'input window, operand 2, single buffered']
    #allocation8 [shape = 'u8[4096]{0}', space=vmem, size = 0x1000, scoped, tag = 'output window, operand 0, single buffered']
    %9 = vsyncpa [#allocation3], 0
    %10 = vsyncpa [#allocation6], 0
    %11 = vsyncpa [#allocation4], 0
    // Predicated region
    $region2: #{tpu_custom_call.1} parent=1 // pred_check
      _
    $region3: #{tpu_custom_call.1} parent=1 // pred_check_branch
      %13 = sbr.rel (0) target = $region5
    $region4: #{tpu_custom_call.1} parent=1 // pred_region
      %s15 = ssub.s32 128, 128
      %16 = vsyncadd [#allocation3], %s15
      %s18 = sshll.u32 [#allocation2], 4
      %s19 = int_to_ptr.vmem [resolvable:$true] %s18
      %21 = dma.hbm_to_vmem [thread:$0]  %s0, 128, %s19, [#allocation3]
    $region5: #{tpu_custom_call.1} parent=1 // pred_fallthru
      _
    // Predicated region
    $region6: #{tpu_custom_call.1} parent=1 // pred_check
      _
    $region7: #{tpu_custom_call.1} parent=1 // pred_check_branch
      %23 = sbr.rel (0) target = $region9
    $region8: #{tpu_custom_call.1} parent=1 // pred_region
      %s25 = ssub.s32 128, 128
      %26 = vsyncadd [#allocation6], %s25
      %s28 = sshll.u32 [#allocation5], 4
      %s29 = int_to_ptr.vmem [resolvable:$true] %s28
      %31 = dma.hbm_to_vmem [thread:$0]  %s1, 128, %s29, [#allocation6]
    $region9: #{tpu_custom_call.1} parent=1 // pred_fallthru
      _
    // Predicated region
    $region10: #{tpu_custom_call.1} parent=1 // pred_check
      _
    $region11: #{tpu_custom_call.1} parent=1 // pred_check_branch
      %33 = sbr.rel (0) target = $region13
    $region12: #{tpu_custom_call.1} parent=1 // pred_region
      %s35 = ssub.s32 128, 128
      %36 = vsyncadd [#allocation6], %s35
      %s38 = sshll.u32 [#allocation7], 4
      %s39 = int_to_ptr.vmem [resolvable:$true] %s38
      %41 = dma.hbm_to_vmem [thread:$0]  %s2, 128, %s39, [#allocation6]
    $region13: #{tpu_custom_call.1} parent=1 // pred_fallthru
      _
    // Predicated region
    $region14: #{tpu_custom_call.1} parent=1 // pred_check
      _
    $region15: #{tpu_custom_call.1} parent=1 // pred_check_branch
      %43 = sbr.rel (0) target = $region17
    $region16: #{tpu_custom_call.1} parent=1 // pred_region
      _
    $region17: #{tpu_custom_call.1} parent=1 // pred_fallthru
      _
    // Predicated region
    $region18: #{tpu_custom_call.1} parent=1 // pred_check
      _
    $region19: #{tpu_custom_call.1} parent=1 // pred_check_branch
      %45 = sbr.rel (0) target = $region21
    $region20: #{tpu_custom_call.1} parent=1 // pred_region
      %46 = dma.done [#allocation3], 128
    $region21: #{tpu_custom_call.1} parent=1 // pred_fallthru
      _
    // Predicated region
    $region22: #{tpu_custom_call.1} parent=1 // pred_check
      _
    $region23: #{tpu_custom_call.1} parent=1 // pred_check_branch
      %48 = sbr.rel (0) target = $region25
    $region24: #{tpu_custom_call.1} parent=1 // pred_region
      %49 = dma.done [#allocation6], 128
    $region25: #{tpu_custom_call.1} parent=1 // pred_fallthru
      _
    // Predicated region
    $region26: #{tpu_custom_call.1} parent=1 // pred_check
      _
    $region27: #{tpu_custom_call.1} parent=1 // pred_check_branch
      %51 = sbr.rel (0) target = $region29
    $region28: #{tpu_custom_call.1} parent=1 // pred_region
      %52 = dma.done [#allocation6], 128
    $region29: #{tpu_custom_call.1} parent=1 // pred_fallthru
      _
    %v53 = vld [vmem:[#allocation2] sm:$0xff]
    %vm54 = vcmask 130048
    %55 = vst.msk [vmem:[#allocation8] sm:$0xff] %vm54, %v53
    %v56 = vld [vmem:[#allocation5] sm:$0xff]
    %58 = vrot.lane.b32.xlu0 %v56, 16
    %v59 = vpop.permute.xlu0 %58
    %vm61 = vcmask 195712
    %62 = vst.msk [vmem:[#allocation8] sm:$0xff] %vm61, %v59
    %v63 = vld [vmem:[#allocation7] sm:$0xff]
    %65 = vrot.lane.b32.xlu0 %v63, 24
    %v66 = vpop.permute.xlu0 %65
    %vm68 = vcmask 326848
    %69 = vst.msk [vmem:[#allocation8] sm:$0xff] %vm68, %v66
    %v70 = vld [vmem:[%s3] sm:$0xff]
    %72 = vrot.lane.b32.xlu0 %v70, 40
    %v73 = vpop.permute.xlu0 %72
    %vm75 = vcmask 392512
    %76 = vst.msk [vmem:[#allocation8] sm:$0xff] %vm75, %v73
    // Predicated region
    $region30: #{tpu_custom_call.1} parent=1 // pred_check
      _
    $region31: #{tpu_custom_call.1} parent=1 // pred_check_branch
      %78 = sbr.rel (0) target = $region33
    $region32: #{tpu_custom_call.1} parent=1 // pred_region
      %s80 = ssub.s32 128, 128
      %81 = vsyncadd [#allocation4], %s80
      %s83 = sshll.u32 [#allocation8], 4
      %s84 = int_to_ptr.vmem [resolvable:$true] %s83
      %86 = dma.vmem_to_hbm [thread:$0]  %s84, 128, %s4, [#allocation4]
    $region33: #{tpu_custom_call.1} parent=1 // pred_fallthru
      _
    // Predicated region
    $region34: #{tpu_custom_call.1} parent=1 // pred_check
      _
    $region35: #{tpu_custom_call.1} parent=1 // pred_check_branch
      %88 = sbr.rel (0) target = $region37
    $region36: #{tpu_custom_call.1} parent=1 // pred_region
      %89 = dma.done [#allocation4], 128
    $region37: #{tpu_custom_call.1} parent=1 // pred_fallthru
      _
    %90 = vsyncpa [#allocation3], 1
    %91 = vsyncpa [#allocation6], 1
    %92 = vsyncpa [#allocation4], 1

</llo_original>
